<compile_context>
chip_gen: v7x
topology: tpu7x:2x2x1
jax: 0.10.0
libtpu: 0.0.40
codegen_flags: <defaults>
</compile_context>

<pallas_src>
import math

import jax
import jax.numpy as jnp
from jax.experimental import pallas as pl
from jax.experimental.pallas import tpu as pltpu


def _round_up(v, m):
    return (v + m - 1) // m * m


def _mlp(x, w1_ref, b1_ref, w2_ref, b2_ref):
    """relu(relu(x @ w1 + b1) @ w2 + b2); BN and l/sqrt(E) already folded.

    Weights are block-diagonal kron(I_pack, W) so the packed (rows, pack*E)
    layout goes straight through the MXU.  Everything f32.
    """
    h = jnp.dot(x, w1_ref[...], preferred_element_type=jnp.float32) + b1_ref[...]
    h = jnp.maximum(h, 0.0)
    # TODO(synk): Dropout(0.2) is identity in eval mode; training-mode dropout
    # (pltpu.prng_*) not implemented.
    h = jnp.dot(h, w2_ref[...], preferred_element_type=jnp.float32) + b2_ref[...]
    return jnp.maximum(h, 0.0)


def _entity_emb_kernel_types(x_ref, w1_ref, b1_ref, w2_ref, b2_ref,
                             tab_ref, idx_ref, o_ref):
    x = x_ref[...].astype(jnp.float32)
    att = _mlp(x, w1_ref, b1_ref, w2_ref, b2_ref)

    # Fused embedding lookup: a (2*pack)-hot row over the block-diagonal,
    # pre-scaled table -> one MXU matmul produces both car+user embeddings
    # for all `pack` original rows packed into this row.
    tb = x.shape[0]
    n_tab_rows = tab_ref.shape[0]            # pack * n_tab
    iota = jax.lax.broadcasted_iota(jnp.int32, (tb, n_tab_rows), 1)
    n_idx = idx_ref.shape[1]                 # 2 * pack
    hot = iota == idx_ref[:, 0:1]
    for k in range(1, n_idx):                # static small loop
        hot = hot | (iota == idx_ref[:, k:k + 1])
    # NOTE: out-of-range / negative type indices match no column -> silent
    # zero embedding (same behavior as the previous kernel).
    emb = jnp.dot(hot.astype(jnp.float32), tab_ref[...],
                  preferred_element_type=jnp.float32)

    o_ref[...] = (att + emb + x).astype(o_ref.dtype)


def _entity_emb_kernel_notypes(x_ref, w1_ref, b1_ref, w2_ref, b2_ref, o_ref):
    x = x_ref[...].astype(jnp.float32)
    att = _mlp(x, w1_ref, b1_ref, w2_ref, b2_ref)
    o_ref[...] = (att + x).astype(o_ref.dtype)


def prepare_params(raw, l=0.01):
    """One-time prep: fold BN + l/sqrt(E) into the Linears / table, build the
    block-diagonal (lane-dense) forms, pack car/user tables into one table."""
    E = int(raw["w1"].shape[0])
    pack = 128 // E if (E < 128 and 128 % E == 0) else 1
    scale = float(l) / math.sqrt(float(E))
    if scale <= 0:
        raise ValueError("l must be > 0 (scale is folded through the ReLU).")

    # BN (inference) fold:  (z)*s + t  with s = gamma/sqrt(var+eps), t = beta - mean*s
    w1f = (raw["w1"] * raw["s1"]).astype(jnp.float32)
    b1f = (raw["b1"] * raw["s1"] + raw["t1"]).astype(jnp.float32)
    # l/sqrt(E) fold through the final ReLU (scale > 0):
    w2f = (raw["w2"] * raw["s2"] * scale).astype(jnp.float32)
    b2f = ((raw["b2"] * raw["s2"] + raw["t2"]) * scale).astype(jnp.float32)

    n_car = int(raw["car_tab"].shape[0])
    n_user = int(raw["user_tab"].shape[0])
    car_rows = _round_up(n_car, 8)
    user_rows = _round_up(n_user, 8)
    n_tab = car_rows + user_rows
    tab = jnp.zeros((n_tab, E), jnp.float32)
    tab = tab.at[:n_car].set(raw["car_tab"].astype(jnp.float32))
    tab = tab.at[car_rows:car_rows + n_user].set(raw["user_tab"].astype(jnp.float32))
    tab = tab * scale

    eye = jnp.eye(pack, dtype=jnp.float32)
    return dict(
        w1=jnp.kron(eye, w1f), b1=jnp.tile(b1f, (1, pack)),
        w2=jnp.kron(eye, w2f), b2=jnp.tile(b2f, (1, pack)),
        tab=jnp.kron(eye, tab),
        pack=pack, E=E, n_tab=n_tab, user_off=car_rows, l=float(l))


def entity_emb_forward(x, fparams, x_car_type=None, x_user_type=None, l=0.01,
                       tile_rows=4096):
    B, E = x.shape
    if E != fparams["E"]:
        raise ValueError("emb_size mismatch with prepared params")
    if abs(float(l) - fparams["l"]) > 1e-12:
        raise ValueError("l is folded into the prepared params; re-run prepare_params(l=...)")
    pack = fparams["pack"]
    use_types = not (x_car_type is None or x_user_type is None)

    pad = (-B) % pack
    if pad:
        # TODO(synk): non-pack-aligned batch falls back to pad+slice (one extra
        # HBM pass each); keep B a multiple of `pack` to avoid it.
        x = jnp.pad(x, ((0, pad), (0, 0)))
    Bp = B + pad
    rows = Bp // pack
    W = pack * E                     # 128 (lane-dense) in the typical case
    xr = x.reshape(rows, W)          # contiguous reshape -> bitcast, no HBM copy

    # Batch tile over packed rows: ~2 MiB streamed tile, multiple of 8
    # sublanes, but keep >= ~8 grid steps for megacore / pipelining.
    if rows <= tile_rows:
        tb = rows                    # single (or full-dim) block
    else:
        tb = max(8, _round_up(min(int(tile_rows), pl.cdiv(rows, 8)), 8))
    grid = (pl.cdiv(rows, tb),)      # partial last block handled by Pallas

    row_spec = pl.BlockSpec((tb, W), lambda i: (i, 0))

    def resident(a):
        return pl.BlockSpec(a.shape, lambda i: (0, 0))

    w1, b1, w2, b2 = fparams["w1"], fparams["b1"], fparams["w2"], fparams["b2"]
    inputs = [xr, w1, b1, w2, b2]
    in_specs = [row_spec, resident(w1), resident(b1), resident(w2), resident(b2)]
    param_bytes = 4 * (w1.size + b1.size + w2.size + b2.size)

    if use_types:
        tab = fparams["tab"]
        n_tab = fparams["n_tab"]
        car = x_car_type.astype(jnp.int32).reshape(-1)
        user = x_user_type.astype(jnp.int32).reshape(-1) + fparams["user_off"]
        if pad:
            car = jnp.pad(car, (0, pad))
            user = jnp.pad(user, (0, pad))
        chunk = (jnp.arange(pack, dtype=jnp.int32) * n_tab)[None, :]
        idx = jnp.concatenate([car.reshape(rows, pack) + chunk,
                               user.reshape(rows, pack) + chunk], axis=1)
        inputs += [tab, idx]
        in_specs += [resident(tab), pl.BlockSpec((tb, 2 * pack), lambda i: (i, 0))]
        param_bytes += 4 * tab.size
        kernel = _entity_emb_kernel_types
    else:
        kernel = _entity_emb_kernel_notypes

    # VMEM budget: double-buffered streamed tiles (x + out [+ idx]) + residents
    # (counted twice for safety) + elementwise/two-hot intermediates + headroom.
    stream_row = 2 * W * 4 + (2 * pack * 4 if use_types else 0)
    scratch_row = 2 * W * 4 + (2 * pack * fparams["n_tab"] * 4 if use_types else 0)
    vmem_limit = int(min(max(2 * tb * stream_row + 2 * param_bytes
                             + tb * scratch_row + (8 << 20), 16 << 20),
                         48 << 20))                 # safe on v5e/v6e/v7x

    flops = rows * (4 * W * W
                    + (2 * pack * fparams["n_tab"] * W if use_types else 0))
    bytes_accessed = (2 * rows * W * 4 + param_bytes
                      + (rows * 2 * pack * 4 if use_types else 0))

    out = pl.pallas_call(
        kernel,
        out_shape=jax.ShapeDtypeStruct((rows, W), x.dtype),
        grid=grid,
        in_specs=in_specs,
        out_specs=row_spec,
        compiler_params=pltpu.CompilerParams(
            dimension_semantics=("parallel",),
            vmem_limit_bytes=vmem_limit),
        cost_estimate=pl.CostEstimate(flops=int(flops), transcendentals=0,
                                      bytes_accessed=int(bytes_accessed)),
    )(*inputs)

    out = out.reshape(Bp, E)
    return out[:B] if pad else out


def init_params(emb_size, init_size=0.01, seed=0):
    """Deterministic synthetic parameters (shapes from EnityEmb.__init__)."""
    key = jax.random.PRNGKey(seed)
    keys = jax.random.split(key, 12)
    eps = 1e-5

    def bn_fold(kg, kb, km, kv, n):
        gamma = 1.0 + 0.1 * jax.random.normal(kg, (1, n), jnp.float32)
        beta = 0.1 * jax.random.normal(kb, (1, n), jnp.float32)
        mean = 0.1 * jax.random.normal(km, (1, n), jnp.float32)
        var = jnp.abs(jax.random.normal(kv, (1, n), jnp.float32)) + 0.5
        s = gamma / jnp.sqrt(var + eps)
        t = beta - mean * s
        return s, t

    w1 = init_size * jax.random.normal(keys[0], (emb_size, emb_size), jnp.float32)
    b1 = init_size * jax.random.normal(keys[1], (1, emb_size), jnp.float32)
    w2 = init_size * jax.random.normal(keys[2], (emb_size, emb_size), jnp.float32)
    b2 = init_size * jax.random.normal(keys[3], (1, emb_size), jnp.float32)
    s1, t1 = bn_fold(keys[4], keys[5], keys[6], keys[7], emb_size)
    s2, t2 = bn_fold(keys[8], keys[9], keys[10], keys[11], emb_size)

    kc, ku = jax.random.split(jax.random.PRNGKey(seed + 1))
    car_tab = init_size * jax.random.normal(kc, (27, emb_size), jnp.float32)
    user_tab = init_size * jax.random.normal(ku, (29, emb_size), jnp.float32)

    return dict(w1=w1, b1=b1, s1=s1, t1=t1,
                w2=w2, b2=b2, s2=s2, t2=t2,
                car_tab=car_tab, user_tab=user_tab)


def _reference(x, raw, car=None, user=None, l=0.01):
    """Pure-JAX reference (unfolded BN, f32) of the same forward pass."""
    E = x.shape[-1]
    h = jnp.maximum((x @ raw["w1"] + raw["b1"]) * raw["s1"] + raw["t1"], 0.0)
    h = jnp.maximum((h @ raw["w2"] + raw["b2"]) * raw["s2"] + raw["t2"], 0.0)
    inv = 1.0 / jnp.sqrt(jnp.float32(E))
    if car is None or user is None:
        enity = l * h * inv
    else:
        ce = raw["car_tab"][car]
        ue = raw["user_tab"][user]
        enity = l * (ce * inv + ue * inv + h * inv)
    return enity + x


if __name__ == "__main__":
    B, E = 8, 32
    raw_params = init_params(E, init_size=0.01, seed=0)
    fparams = prepare_params(raw_params, l=0.01)

    key = jax.random.PRNGKey(0)
    kx, kc, ku = jax.random.split(key, 3)
    x = jax.random.normal(kx, (B, E), jnp.float32)
    x_car_type = jax.random.randint(kc, (B,), 0, 27, jnp.int32)
    x_user_type = jax.random.randint(ku, (B,), 0, 29, jnp.int32)

    # Branch with type embeddings.
    out1 = entity_emb_forward(x, fparams, x_car_type, x_user_type, l=0.01)
    out1 = jax.block_until_ready(out1)
    ref1 = _reference(x, raw_params, x_car_type, x_user_type, l=0.01)
    assert jnp.allclose(out1, ref1, atol=1e-5, rtol=1e-5), \
        float(jnp.max(jnp.abs(out1 - ref1)))

    # Branch without type embeddings (specialized kernel, no table/idx DMA).
    out2 = entity_emb_forward(x, fparams, None, None, l=0.01)
    out2 = jax.block_until_ready(out2)
    ref2 = _reference(x, raw_params, None, None, l=0.01)
    assert jnp.allclose(out2, ref2, atol=1e-5, rtol=1e-5), \
        float(jnp.max(jnp.abs(out2 - ref2)))

    print("KERNEL_OK")
</pallas_src>

<mosaic_0001>
module attributes {stable_mosaic.version = 11 : i64} {
  func.func @_entity_emb_kernel_types(%arg0: i32, %arg1: memref<2x128xf32, #tpu.memory_space<vmem>>, %arg2: memref<128x128xf32, #tpu.memory_space<vmem>>, %arg3: memref<1x128xf32, #tpu.memory_space<vmem>>, %arg4: memref<128x128xf32, #tpu.memory_space<vmem>>, %arg5: memref<1x128xf32, #tpu.memory_space<vmem>>, %arg6: memref<256x128xf32, #tpu.memory_space<vmem>>, %arg7: memref<2x8xi32, #tpu.memory_space<vmem>>, %arg8: memref<2x128xf32, #tpu.memory_space<vmem>>) attributes {dimension_semantics = [#tpu.dimension_semantics<parallel>], iteration_bounds = array<i64: 1>, scalar_prefetch = 0 : i64, scratch_operands = 0 : i64, tpu.core_type = #tpu.core_type<tc>, window_params = [{transform_indices = @transform_0, window_bounds = array<i64: 2, 128>}, {pipeline_mode = #tpu.pipeline_mode<synchronous>, transform_indices = @transform_1, window_bounds = array<i64: 128, 128>}, {pipeline_mode = #tpu.pipeline_mode<synchronous>, transform_indices = @transform_2, window_bounds = array<i64: 1, 128>}, {pipeline_mode = #tpu.pipeline_mode<synchronous>, transform_indices = @transform_3, window_bounds = array<i64: 128, 128>}, {pipeline_mode = #tpu.pipeline_mode<synchronous>, transform_indices = @transform_4, window_bounds = array<i64: 1, 128>}, {pipeline_mode = #tpu.pipeline_mode<synchronous>, transform_indices = @transform_5, window_bounds = array<i64: 256, 128>}, {transform_indices = @transform_6, window_bounds = array<i64: 2, 8>}, {transform_indices = @transform_7, window_bounds = array<i64: 2, 128>}]} {
    %c0 = arith.constant 0 : index
    %c0_0 = arith.constant 0 : index
    %0 = vector.load %arg1[%c0, %c0_0] : memref<2x128xf32, #tpu.memory_space<vmem>>, vector<2x128xf32>
    %c0_1 = arith.constant 0 : index
    %c0_2 = arith.constant 0 : index
    %1 = vector.load %arg2[%c0_1, %c0_2] : memref<128x128xf32, #tpu.memory_space<vmem>>, vector<128x128xf32>
    %cst = arith.constant dense<0.000000e+00> : vector<2x128xf32>
    %2 = tpu.matmul %0, %1, %cst {dimension_numbers = #tpu.dot_dimension_numbers<[1], [0], [0], [1], [0, 0, 1, 1], [], []>} : vector<2x128xf32>, vector<128x128xf32>, vector<2x128xf32> -> vector<2x128xf32>
    %c0_3 = arith.constant 0 : index
    %c0_4 = arith.constant 0 : index
    %3 = vector.load %arg3[%c0_3, %c0_4] : memref<1x128xf32, #tpu.memory_space<vmem>>, vector<1x128xf32>
    %4 = vector.broadcast %3 : vector<1x128xf32> to vector<2x128xf32>
    %5 = arith.addf %2, %4 : vector<2x128xf32>
    %cst_5 = arith.constant 0.000000e+00 : f32
    %6 = vector.broadcast %cst_5 : f32 to vector<2x128xf32>
    %7 = arith.maximumf %5, %6 : vector<2x128xf32>
    %c0_6 = arith.constant 0 : index
    %c0_7 = arith.constant 0 : index
    %8 = vector.load %arg4[%c0_6, %c0_7] : memref<128x128xf32, #tpu.memory_space<vmem>>, vector<128x128xf32>
    %cst_8 = arith.constant dense<0.000000e+00> : vector<2x128xf32>
    %9 = tpu.matmul %7, %8, %cst_8 {dimension_numbers = #tpu.dot_dimension_numbers<[1], [0], [0], [1], [0, 0, 1, 1], [], []>} : vector<2x128xf32>, vector<128x128xf32>, vector<2x128xf32> -> vector<2x128xf32>
    %c0_9 = arith.constant 0 : index
    %c0_10 = arith.constant 0 : index
    %10 = vector.load %arg5[%c0_9, %c0_10] : memref<1x128xf32, #tpu.memory_space<vmem>>, vector<1x128xf32>
    %11 = vector.broadcast %10 : vector<1x128xf32> to vector<2x128xf32>
    %12 = arith.addf %9, %11 : vector<2x128xf32>
    %cst_11 = arith.constant 0.000000e+00 : f32
    %13 = vector.broadcast %cst_11 : f32 to vector<2x128xf32>
    %14 = arith.maximumf %12, %13 : vector<2x128xf32>
    %15 = tpu.iota {dimensions = array<i32: 1>} : vector<2x256xi32>
    %c0_12 = arith.constant 0 : index
    %c0_13 = arith.constant 0 : index
    %16 = vector.load %arg7[%c0_12, %c0_13] : memref<2x8xi32, #tpu.memory_space<vmem>>, vector<2x1xi32>
    %17 = vector.broadcast %16 : vector<2x1xi32> to vector<2x256xi32>
    %18 = arith.cmpi eq, %15, %17 : vector<2x256xi32>
    %c0_14 = arith.constant 0 : index
    %c1 = arith.constant 1 : index
    %19 = vector.load %arg7[%c0_14, %c1] : memref<2x8xi32, #tpu.memory_space<vmem>>, vector<2x1xi32>
    %20 = vector.broadcast %19 : vector<2x1xi32> to vector<2x256xi32>
    %21 = arith.cmpi eq, %15, %20 : vector<2x256xi32>
    %22 = arith.ori %18, %21 : vector<2x256xi1>
    %c0_15 = arith.constant 0 : index
    %c2 = arith.constant 2 : index
    %23 = vector.load %arg7[%c0_15, %c2] : memref<2x8xi32, #tpu.memory_space<vmem>>, vector<2x1xi32>
    %24 = vector.broadcast %23 : vector<2x1xi32> to vector<2x256xi32>
    %25 = arith.cmpi eq, %15, %24 : vector<2x256xi32>
    %26 = arith.ori %22, %25 : vector<2x256xi1>
    %c0_16 = arith.constant 0 : index
    %c3 = arith.constant 3 : index
    %27 = vector.load %arg7[%c0_16, %c3] : memref<2x8xi32, #tpu.memory_space<vmem>>, vector<2x1xi32>
    %28 = vector.broadcast %27 : vector<2x1xi32> to vector<2x256xi32>
    %29 = arith.cmpi eq, %15, %28 : vector<2x256xi32>
    %30 = arith.ori %26, %29 : vector<2x256xi1>
    %c0_17 = arith.constant 0 : index
    %c4 = arith.constant 4 : index
    %31 = vector.load %arg7[%c0_17, %c4] : memref<2x8xi32, #tpu.memory_space<vmem>>, vector<2x1xi32>
    %32 = vector.broadcast %31 : vector<2x1xi32> to vector<2x256xi32>
    %33 = arith.cmpi eq, %15, %32 : vector<2x256xi32>
    %34 = arith.ori %30, %33 : vector<2x256xi1>
    %c0_18 = arith.constant 0 : index
    %c5 = arith.constant 5 : index
    %35 = vector.load %arg7[%c0_18, %c5] : memref<2x8xi32, #tpu.memory_space<vmem>>, vector<2x1xi32>
    %36 = vector.broadcast %35 : vector<2x1xi32> to vector<2x256xi32>
    %37 = arith.cmpi eq, %15, %36 : vector<2x256xi32>
    %38 = arith.ori %34, %37 : vector<2x256xi1>
    %c0_19 = arith.constant 0 : index
    %c6 = arith.constant 6 : index
    %39 = vector.load %arg7[%c0_19, %c6] : memref<2x8xi32, #tpu.memory_space<vmem>>, vector<2x1xi32>
    %40 = vector.broadcast %39 : vector<2x1xi32> to vector<2x256xi32>
    %41 = arith.cmpi eq, %15, %40 : vector<2x256xi32>
    %42 = arith.ori %38, %41 : vector<2x256xi1>
    %c0_20 = arith.constant 0 : index
    %c7 = arith.constant 7 : index
    %43 = vector.load %arg7[%c0_20, %c7] : memref<2x8xi32, #tpu.memory_space<vmem>>, vector<2x1xi32>
    %44 = vector.broadcast %43 : vector<2x1xi32> to vector<2x256xi32>
    %45 = arith.cmpi eq, %15, %44 : vector<2x256xi32>
    %46 = arith.ori %42, %45 : vector<2x256xi1>
    %47 = arith.extui %46 : vector<2x256xi1> to vector<2x256xi32>
    %48 = arith.sitofp %47 : vector<2x256xi32> to vector<2x256xf32>
    %c0_21 = arith.constant 0 : index
    %c0_22 = arith.constant 0 : index
    %49 = vector.load %arg6[%c0_21, %c0_22] : memref<256x128xf32, #tpu.memory_space<vmem>>, vector<256x128xf32>
    %cst_23 = arith.constant dense<0.000000e+00> : vector<2x128xf32>
    %50 = tpu.matmul %48, %49, %cst_23 {dimension_numbers = #tpu.dot_dimension_numbers<[1], [0], [0], [1], [0, 0, 1, 1], [], []>} : vector<2x256xf32>, vector<256x128xf32>, vector<2x128xf32> -> vector<2x128xf32>
    %51 = arith.addf %14, %50 : vector<2x128xf32>
    %52 = arith.addf %51, %0 : vector<2x128xf32>
    %c0_24 = arith.constant 0 : index
    %c0_25 = arith.constant 0 : index
    %53 = vector.load %arg8[%c0_24, %c0_25] : memref<2x128xf32, #tpu.memory_space<vmem>>, vector<2x128xf32>
    tpu.vector_store %arg8[%c0_24, %c0_25], %52 {strides = array<i32>} : memref<2x128xf32, #tpu.memory_space<vmem>>, vector<2x128xf32>,
    return
  }
  func.func @transform_0(%arg0: i32) -> (i32, i32) {
    %c0_i32 = arith.constant 0 : i32
    %c0_i32_0 = arith.constant 0 : i32
    return %arg0, %c0_i32 : i32, i32
  }
  func.func @transform_1(%arg0: i32) -> (i32, i32) {
    %c0_i32 = arith.constant 0 : i32
    %c0_i32_0 = arith.constant 0 : i32
    %c0_i32_1 = arith.constant 0 : i32
    return %c0_i32, %c0_i32_0 : i32, i32
  }
  func.func @transform_2(%arg0: i32) -> (i32, i32) {
    %c0_i32 = arith.constant 0 : i32
    %c0_i32_0 = arith.constant 0 : i32
    %c0_i32_1 = arith.constant 0 : i32
    return %c0_i32, %c0_i32_0 : i32, i32
  }
  func.func @transform_3(%arg0: i32) -> (i32, i32) {
    %c0_i32 = arith.constant 0 : i32
    %c0_i32_0 = arith.constant 0 : i32
    %c0_i32_1 = arith.constant 0 : i32
    return %c0_i32, %c0_i32_0 : i32, i32
  }
  func.func @transform_4(%arg0: i32) -> (i32, i32) {
    %c0_i32 = arith.constant 0 : i32
    %c0_i32_0 = arith.constant 0 : i32
    %c0_i32_1 = arith.constant 0 : i32
    return %c0_i32, %c0_i32_0 : i32, i32
  }
  func.func @transform_5(%arg0: i32) -> (i32, i32) {
    %c0_i32 = arith.constant 0 : i32
    %c0_i32_0 = arith.constant 0 : i32
    %c0_i32_1 = arith.constant 0 : i32
    return %c0_i32, %c0_i32_0 : i32, i32
  }
  func.func @transform_6(%arg0: i32) -> (i32, i32) {
    %c0_i32 = arith.constant 0 : i32
    %c0_i32_0 = arith.constant 0 : i32
    return %arg0, %c0_i32 : i32, i32
  }
  func.func @transform_7(%arg0: i32) -> (i32, i32) {
    %c0_i32 = arith.constant 0 : i32
    %c0_i32_0 = arith.constant 0 : i32
    return %arg0, %c0_i32 : i32, i32
  }
}

</mosaic_0001>

<llo_original>
// kernel: tpu_custom_call.1
$region0: #{tpu_custom_call.1}
  #allocation0 [shape = 'u32[]', space=smem, size = 0x4, offset = 0x4, fixed_abs, tag = 'smem constant byte address 0x4 - core index']
  #allocation1 [shape = 'u32[144,128]{1,0:T(1,128)}', space=vmem, size = 0x12000, scoped, tag = 'internal scratch']
  %s0 = inlined_call_operand.hbm [shape: f32[2,128], index: 0, kind: input, shape index: {}]
  %s1 = inlined_call_operand.hbm [shape: f32[128,128], index: 1, kind: input, shape index: {}]
  %s2 = inlined_call_operand.vmem [shape: f32[1,128], index: 2, kind: input, shape index: {}]
  %s3 = inlined_call_operand.hbm [shape: f32[128,128], index: 3, kind: input, shape index: {}]
  %s4 = inlined_call_operand.vmem [shape: f32[1,128], index: 4, kind: input, shape index: {}]
  %s5 = inlined_call_operand.hbm [shape: f32[256,128], index: 5, kind: input, shape index: {}]
  %s6 = inlined_call_operand.vmem [shape: s32[2,8], index: 6, kind: input, shape index: {}]
  %s7 = inlined_call_operand.hbm [shape: f32[2,128], index: 7, kind: output, shape index: {}]
  %s8 = sld [smem:[#allocation0]]
  $region54: #{tpu_custom_call.1} parent=0
    _
  %s10 = ssub.s32 1, %s8
  %s11 = scalar_select 0, %s10, %s8
  $region1: #{tpu_custom_call.1} parent=0
    #allocation2 [shape = 'u8[1024]{0}', space=vmem, size = 0x400, scoped, tag = 'input window, operand 0, single buffered']
    #allocation3 [shape = 's32[1]{0}', space=sflag, size = 0x4, scoped, tag = 'scoped memory for tpu_custom_call.1']
    #allocation4 [shape = 's32[1]{0}', space=sflag, size = 0x4, scoped, tag = 'scoped memory for tpu_custom_call.1']
    #allocation5 [shape = 'u8[65536]{0}', space=vmem, size = 0x10000, scoped, tag = 'input window, operand 1, single buffered']
    #allocation6 [shape = 's32[1]{0}', space=sflag, size = 0x4, scoped, tag = 'scoped memory for tpu_custom_call.1']
    #allocation7 [shape = 'u8[65536]{0}', space=vmem, size = 0x10000, scoped, tag = 'input window, operand 3, single buffered']
    #allocation8 [shape = 'u8[131072]{0}', space=vmem, size = 0x20000, scoped, tag = 'input window, operand 5, single buffered']
    #allocation9 [shape = 's32[1]{0}', space=sflag, size = 0x4, scoped, tag = 'scoped memory for tpu_custom_call.1']
    #allocation10 [shape = 'u8[1024]{0}', space=vmem, size = 0x400, scoped, tag = 'output window, operand 0, single buffered']
    %12 = vsyncpa [#allocation3], 0
    %13 = vsyncpa [#allocation6], 0
    %14 = vsyncpa [#allocation9], 0
    %15 = vsyncpa [#allocation4], 0
    // Predicated region
    $region2: #{tpu_custom_call.1} parent=1 // pred_check
      _
    $region3: #{tpu_custom_call.1} parent=1 // pred_check_branch
      %17 = sbr.rel (0) target = $region5
    $region4: #{tpu_custom_call.1} parent=1 // pred_region
      %s19 = ssub.s32 32, 32
      %20 = vsyncadd [#allocation3], %s19
      %s22 = sshll.u32 [#allocation2], 4
      %s23 = int_to_ptr.vmem [resolvable:$true] %s22
      %25 = dma.hbm_to_vmem [thread:$0]  %s0, 32, %s23, [#allocation3]
    $region5: #{tpu_custom_call.1} parent=1 // pred_fallthru
      _
    // Predicated region
    $region6: #{tpu_custom_call.1} parent=1 // pred_check
      _
    $region7: #{tpu_custom_call.1} parent=1 // pred_check_branch
      %27 = sbr.rel (0) target = $region9
    $region8: #{tpu_custom_call.1} parent=1 // pred_region
      %s29 = ssub.s32 2048, 2048
      %30 = vsyncadd [#allocation6], %s29
      %s31 = sshll.u32 [#allocation5], 4
      %s32 = int_to_ptr.vmem [resolvable:$true] %s31
      %37 = dma.hbm_to_vmem [thread:$0]  %s1, 2048, %s32, [#allocation6], 128, 128, 8
    $region9: #{tpu_custom_call.1} parent=1 // pred_fallthru
      _
    // Predicated region
    $region10: #{tpu_custom_call.1} parent=1 // pred_check
      _
    $region11: #{tpu_custom_call.1} parent=1 // pred_check_branch
      %39 = sbr.rel (0) target = $region13
    $region12: #{tpu_custom_call.1} parent=1 // pred_region
      _
    $region13: #{tpu_custom_call.1} parent=1 // pred_fallthru
      _
    // Predicated region
    $region14: #{tpu_custom_call.1} parent=1 // pred_check
      _
    $region15: #{tpu_custom_call.1} parent=1 // pred_check_branch
      %41 = sbr.rel (0) target = $region17
    $region16: #{tpu_custom_call.1} parent=1 // pred_region
      %s43 = ssub.s32 2048, 2048
      %44 = vsyncadd [#allocation6], %s43
      %s45 = sshll.u32 [#allocation7], 4
      %s46 = int_to_ptr.vmem [resolvable:$true] %s45
      %51 = dma.hbm_to_vmem [thread:$0]  %s3, 2048, %s46, [#allocation6], 128, 128, 8
    $region17: #{tpu_custom_call.1} parent=1 // pred_fallthru
      _
    // Predicated region
    $region18: #{tpu_custom_call.1} parent=1 // pred_check
      _
    $region19: #{tpu_custom_call.1} parent=1 // pred_check_branch
      %53 = sbr.rel (0) target = $region21
    $region20: #{tpu_custom_call.1} parent=1 // pred_region
      _
    $region21: #{tpu_custom_call.1} parent=1 // pred_fallthru
      _
    // Predicated region
    $region22: #{tpu_custom_call.1} parent=1 // pred_check
      _
    $region23: #{tpu_custom_call.1} parent=1 // pred_check_branch
      %55 = sbr.rel (0) target = $region25
    $region24: #{tpu_custom_call.1} parent=1 // pred_region
      %s57 = ssub.s32 4096, 4096
      %58 = vsyncadd [#allocation9], %s57
      %s59 = sshll.u32 [#allocation8], 4
      %s60 = int_to_ptr.vmem [resolvable:$true] %s59
      %65 = dma.hbm_to_vmem [thread:$0]  %s5, 4096, %s60, [#allocation9], 128, 128, 8
    $region25: #{tpu_custom_call.1} parent=1 // pred_fallthru
      _
    // Predicated region
    $region26: #{tpu_custom_call.1} parent=1 // pred_check
      _
    $region27: #{tpu_custom_call.1} parent=1 // pred_check_branch
      %67 = sbr.rel (0) target = $region29
    $region28: #{tpu_custom_call.1} parent=1 // pred_region
      _
    $region29: #{tpu_custom_call.1} parent=1 // pred_fallthru
      _
    // Predicated region
    $region30: #{tpu_custom_call.1} parent=1 // pred_check
      _
    $region31: #{tpu_custom_call.1} parent=1 // pred_check_branch
      %69 = sbr.rel (0) target = $region33
    $region32: #{tpu_custom_call.1} parent=1 // pred_region
      %70 = dma.done [#allocation3], 32
    $region33: #{tpu_custom_call.1} parent=1 // pred_fallthru
      _
    // Predicated region
    $region34: #{tpu_custom_call.1} parent=1 // pred_check
      _
    $region35: #{tpu_custom_call.1} parent=1 // pred_check_branch
      %72 = sbr.rel (0) target = $region37
    $region36: #{tpu_custom_call.1} parent=1 // pred_region
      %73 = dma.done [#allocation6], 2048
    $region37: #{tpu_custom_call.1} parent=1 // pred_fallthru
      _
    // Predicated region
    $region38: #{tpu_custom_call.1} parent=1 // pred_check
      _
    $region39: #{tpu_custom_call.1} parent=1 // pred_check_branch
      %75 = sbr.rel (0) target = $region41
    $region40: #{tpu_custom_call.1} parent=1 // pred_region
      %76 = dma.done [#allocation6], 2048
    $region41: #{tpu_custom_call.1} parent=1 // pred_fallthru
      _
    // Predicated region
    $region42: #{tpu_custom_call.1} parent=1 // pred_check
      _
    $region43: #{tpu_custom_call.1} parent=1 // pred_check_branch
      %78 = sbr.rel (0) target = $region45
    $region44: #{tpu_custom_call.1} parent=1 // pred_region
      %79 = dma.done [#allocation9], 4096
    $region45: #{tpu_custom_call.1} parent=1 // pred_fallthru
      _
    %v80 = vld [vmem:[#allocation2] sm:$0x3]
    %v81 = vld [vmem:[#allocation5] sm:$0xff]
    %v82 = vld [vmem:[#allocation5 + $0x8] sm:$0xff]
    %v83 = vld [vmem:[#allocation5 + $0x10] sm:$0xff]
    %v84 = vld [vmem:[#allocation5 + $0x18] sm:$0xff]
    %v85 = vld [vmem:[#allocation5 + $0x20] sm:$0xff]
    %v86 = vld [vmem:[#allocation5 + $0x28] sm:$0xff]
    %v87 = vld [vmem:[#allocation5 + $0x30] sm:$0xff]
    %v88 = vld [vmem:[#allocation5 + $0x38] sm:$0xff]
    %v89 = vld [vmem:[#allocation5 + $0x40] sm:$0xff]
    %v90 = vld [vmem:[#allocation5 + $0x48] sm:$0xff]
    %v91 = vld [vmem:[#allocation5 + $0x50] sm:$0xff]
    %v92 = vld [vmem:[#allocation5 + $0x58] sm:$0xff]
    %v93 = vld [vmem:[#allocation5 + $0x60] sm:$0xff]
    %v94 = vld [vmem:[#allocation5 + $0x68] sm:$0xff]
    %v95 = vld [vmem:[#allocation5 + $0x70] sm:$0xff]
    %v96 = vld [vmem:[#allocation5 + $0x78] sm:$0xff]
    %v97 = vld [vmem:[%s2] sm:$0x1]
    %v99 = vlaneseq
    %v100 = vshrl.u32 %v99, 7
    %v101 = vsub.s32 0, %v100
    %v102 = vrot.slane %v97, %v101
    %104 = vmatprep.subr.mxu0 0.0
    %105 = vmatpush1.msra.mxu0 %v81
    %106 = vmatprep.subr.mxu0 0.0
    %107 = vmatpush1.msra.mxu0 %v82
    %108 = vmatprep.subr.mxu0 0.0
    %109 = vmatpush1.msra.mxu0 %v83
    %110 = vmatprep.subr.mxu0 0.0
    %111 = vmatpush1.msra.mxu0 %v84
    %112 = vmatprep.subr.mxu0 0.0
    %113 = vmatpush1.msra.mxu0 %v85
    %114 = vmatprep.subr.mxu0 0.0
    %115 = vmatpush1.msra.mxu0 %v86
    %116 = vmatprep.subr.mxu0 0.0
    %117 = vmatpush1.msra.mxu0 %v87
    %118 = vmatprep.subr.mxu0 0.0
    %119 = vmatpush1.msra.mxu0 %v88
    %120 = vmatprep.subr.mxu0 0.0
    %121 = vmatpush1.msra.mxu0 %v89
    %122 = vmatprep.subr.mxu0 0.0
    %123 = vmatpush1.msra.mxu0 %v90
    %124 = vmatprep.subr.mxu0 0.0
    %125 = vmatpush1.msra.mxu0 %v91
    %126 = vmatprep.subr.mxu0 0.0
    %127 = vmatpush1.msra.mxu0 %v92
    %128 = vmatprep.subr.mxu0 0.0
    %129 = vmatpush1.msra.mxu0 %v93
    %130 = vmatprep.subr.mxu0 0.0
    %131 = vmatpush1.msra.mxu0 %v94
    %132 = vmatprep.subr.mxu0 0.0
    %133 = vmatpush1.msra.mxu0 %v95
    %134 = vmatprep.subr.mxu0 0.0
    %135 = vmatpush1.msra.mxu0 %v96
    %136 = vmatprep.subr.mxu0 0.0
    %137 = vmatpush1.msra.mxu0 0.0
    %138 = vmatprep.subr.mxu0 0.0
    %139 = vmatpush1.msra.mxu0 0.0
    %140 = vmatprep.subr.mxu0 0.0
    %141 = vmatpush1.msra.mxu0 0.0
    %142 = vmatprep.subr.mxu0 0.0
    %143 = vmatpush1.msra.mxu0 0.0
    %144 = vmatprep.subr.mxu0 0.0
    %145 = vmatpush1.msra.mxu0 0.0
    %146 = vmatprep.subr.mxu0 0.0
    %147 = vmatpush1.msra.mxu0 0.0
    %148 = vmatprep.subr.mxu0 0.0
    %149 = vmatpush1.msra.mxu0 0.0
    %150 = vmatprep.subr.mxu0 0.0
    %151 = vmatpush1.msra.mxu0 0.0
    %152 = vmatprep.subr.mxu0 0.0
    %153 = vmatpush1.msra.mxu0 0.0
    %154 = vmatprep.subr.mxu0 0.0
    %155 = vmatpush1.msra.mxu0 0.0
    %156 = vmatprep.subr.mxu0 0.0
    %157 = vmatpush1.msra.mxu0 0.0
    %158 = vmatprep.subr.mxu0 0.0
    %159 = vmatpush1.msra.mxu0 0.0
    %160 = vmatprep.subr.mxu0 0.0
    %161 = vmatpush1.msra.mxu0 0.0
    %162 = vmatprep.subr.mxu0 0.0
    %163 = vmatpush1.msra.mxu0 0.0
    %164 = vmatprep.subr.mxu0 0.0
    %165 = vmatpush1.msra.mxu0 0.0
    %166 = vmatprep.subr.mxu0 0.0
    %167 = vmatpush1.msra.mxu0 0.0
    %168 = vmatprep.mubr.f32.mxu0 0.0
    %169 = vmatmul.mubr.f32.gmra.mrb[0].mxu0 %v80
    %v170 = vpop.f32.mrb[0].mxu0
    %v171 = vadd.f32 %v102, %v170
    %v172 = vpop.f32.mrb[0].mxu0
    %173 = vdwg.mxu0
    %v174 = vmax.f32 %v171, 0.0
    %v175 = vld [vmem:[#allocation7] sm:$0xff]
    %v176 = vld [vmem:[#allocation7 + $0x8] sm:$0xff]
    %v177 = vld [vmem:[#allocation7 + $0x10] sm:$0xff]
    %v178 = vld [vmem:[#allocation7 + $0x18] sm:$0xff]
    %v179 = vld [vmem:[#allocation7 + $0x20] sm:$0xff]
    %v180 = vld [vmem:[#allocation7 + $0x28] sm:$0xff]
    %v181 = vld [vmem:[#allocation7 + $0x30] sm:$0xff]
    %v182 = vld [vmem:[#allocation7 + $0x38] sm:$0xff]
    %v183 = vld [vmem:[#allocation7 + $0x40] sm:$0xff]
    %v184 = vld [vmem:[#allocation7 + $0x48] sm:$0xff]
    %v185 = vld [vmem:[#allocation7 + $0x50] sm:$0xff]
    %v186 = vld [vmem:[#allocation7 + $0x58] sm:$0xff]
    %v187 = vld [vmem:[#allocation7 + $0x60] sm:$0xff]
    %v188 = vld [vmem:[#allocation7 + $0x68] sm:$0xff]
    %v189 = vld [vmem:[#allocation7 + $0x70] sm:$0xff]
    %v190 = vld [vmem:[#allocation7 + $0x78] sm:$0xff]
    %v191 = vld [vmem:[%s4] sm:$0x1]
    %v193 = vlaneseq
    %v194 = vshrl.u32 %v193, 7
    %v195 = vsub.s32 0, %v194
    %v196 = vrot.slane %v191, %v195
    %198 = vmatprep.subr.mxu0 0.0
    %199 = vmatpush1.msra.mxu0 %v175
    %200 = vmatprep.subr.mxu0 0.0
    %201 = vmatpush1.msra.mxu0 %v176
    %202 = vmatprep.subr.mxu0 0.0
    %203 = vmatpush1.msra.mxu0 %v177
    %204 = vmatprep.subr.mxu0 0.0
    %205 = vmatpush1.msra.mxu0 %v178
    %206 = vmatprep.subr.mxu0 0.0
    %207 = vmatpush1.msra.mxu0 %v179
    %208 = vmatprep.subr.mxu0 0.0
    %209 = vmatpush1.msra.mxu0 %v180
    %210 = vmatprep.subr.mxu0 0.0
    %211 = vmatpush1.msra.mxu0 %v181
    %212 = vmatprep.subr.mxu0 0.0
    %213 = vmatpush1.msra.mxu0 %v182
    %214 = vmatprep.subr.mxu0 0.0
    %215 = vmatpush1.msra.mxu0 %v183
    %216 = vmatprep.subr.mxu0 0.0
    %217 = vmatpush1.msra.mxu0 %v184
    %218 = vmatprep.subr.mxu0 0.0
    %219 = vmatpush1.msra.mxu0 %v185
    %220 = vmatprep.subr.mxu0 0.0
    %221 = vmatpush1.msra.mxu0 %v186
    %222 = vmatprep.subr.mxu0 0.0
    %223 = vmatpush1.msra.mxu0 %v187
    %224 = vmatprep.subr.mxu0 0.0
    %225 = vmatpush1.msra.mxu0 %v188
    %226 = vmatprep.subr.mxu0 0.0
    %227 = vmatpush1.msra.mxu0 %v189
    %228 = vmatprep.subr.mxu0 0.0
    %229 = vmatpush1.msra.mxu0 %v190
    %230 = vmatprep.subr.mxu0 0.0
    %231 = vmatpush1.msra.mxu0 0.0
    %232 = vmatprep.subr.mxu0 0.0
    %233 = vmatpush1.msra.mxu0 0.0
    %234 = vmatprep.subr.mxu0 0.0
    %235 = vmatpush1.msra.mxu0 0.0
    %236 = vmatprep.subr.mxu0 0.0
    %237 = vmatpush1.msra.mxu0 0.0
    %238 = vmatprep.subr.mxu0 0.0
    %239 = vmatpush1.msra.mxu0 0.0
    %240 = vmatprep.subr.mxu0 0.0
    %241 = vmatpush1.msra.mxu0 0.0
    %242 = vmatprep.subr.mxu0 0.0
    %243 = vmatpush1.msra.mxu0 0.0
    %244 = vmatprep.subr.mxu0 0.0
    %245 = vmatpush1.msra.mxu0 0.0
    %246 = vmatprep.subr.mxu0 0.0
    %247 = vmatpush1.msra.mxu0 0.0
    %248 = vmatprep.subr.mxu0 0.0
    %249 = vmatpush1.msra.mxu0 0.0
    %250 = vmatprep.subr.mxu0 0.0
    %251 = vmatpush1.msra.mxu0 0.0
    %252 = vmatprep.subr.mxu0 0.0
    %253 = vmatpush1.msra.mxu0 0.0
    %254 = vmatprep.subr.mxu0 0.0
    %255 = vmatpush1.msra.mxu0 0.0
    %256 = vmatprep.subr.mxu0 0.0
    %257 = vmatpush1.msra.mxu0 0.0
    %258 = vmatprep.subr.mxu0 0.0
    %259 = vmatpush1.msra.mxu0 0.0
    %260 = vmatprep.subr.mxu0 0.0
    %261 = vmatpush1.msra.mxu0 0.0
    %262 = vmatprep.mubr.f32.mxu0 0.0
    %263 = vmatmul.mubr.f32.gmra.mrb[0].mxu0 %v174
    %v264 = vpop.f32.mrb[0].mxu0
    %v265 = vadd.f32 %v196, %v264
    %v266 = vpop.f32.mrb[0].mxu0
    %267 = vdwg.mxu0
    %v268 = vmax.f32 %v265, 0.0
    %v269 = vlaneseq
    %v270 = vand.u32 %v269, 127
    %v271 = vadd.s32 %v270, 128
    %v272 = vld [vmem:[%s6] sm:$0x3]
    %273 = vset.pattern.permute.xlu0 0
    %274 = vperm.xlu0 %273, %v272
    %v275 = vpop.permute.xlu0 %274
    %vm276 = vcmp.eq.s32.totalorder %v270, %v275
    %vm277 = vcmp.eq.s32.totalorder %v271, %v275
    %278 = vset.pattern.permute.xlu0 1
    %279 = vperm.xlu0 %278, %v272
    %v280 = vpop.permute.xlu0 %279
    %vm281 = vcmp.eq.s32.totalorder %v270, %v280
    %vm282 = vcmp.eq.s32.totalorder %v271, %v280
    %vm283 = vmor %vm276, %vm281
    %vm284 = vmor %vm277, %vm282
    %285 = vset.pattern.permute.xlu0 2
    %286 = vperm.xlu0 %285, %v272
    %v287 = vpop.permute.xlu0 %286
    %vm288 = vcmp.eq.s32.totalorder %v270, %v287
    %vm289 = vcmp.eq.s32.totalorder %v271, %v287
    %vm290 = vmor %vm283, %vm288
    %vm291 = vmor %vm284, %vm289
    %292 = vset.pattern.permute.xlu0 3
    %293 = vperm.xlu0 %292, %v272
    %v294 = vpop.permute.xlu0 %293
    %vm295 = vcmp.eq.s32.totalorder %v270, %v294
    %vm296 = vcmp.eq.s32.totalorder %v271, %v294
    %vm297 = vmor %vm290, %vm295
    %vm298 = vmor %vm291, %vm296
    %299 = vset.pattern.permute.xlu0 4
    %300 = vperm.xlu0 %299, %v272
    %v301 = vpop.permute.xlu0 %300
    %vm302 = vcmp.eq.s32.totalorder %v270, %v301
    %vm303 = vcmp.eq.s32.totalorder %v271, %v301
    %vm304 = vmor %vm297, %vm302
    %vm305 = vmor %vm298, %vm303
    %306 = vset.pattern.permute.xlu0 5
    %307 = vperm.xlu0 %306, %v272
    %v308 = vpop.permute.xlu0 %307
    %vm309 = vcmp.eq.s32.totalorder %v270, %v308
    %vm310 = vcmp.eq.s32.totalorder %v271, %v308
    %vm311 = vmor %vm304, %vm309
    %vm312 = vmor %vm305, %vm310
    %313 = vset.pattern.permute.xlu0 6
    %314 = vperm.xlu0 %313, %v272
    %v315 = vpop.permute.xlu0 %314
    %vm316 = vcmp.eq.s32.totalorder %v270, %v315
    %vm317 = vcmp.eq.s32.totalorder %v271, %v315
    %vm318 = vmor %vm311, %vm316
    %vm319 = vmor %vm312, %vm317
    %320 = vset.pattern.permute.xlu0 7
    %321 = vperm.xlu0 %320, %v272
    %v322 = vpop.permute.xlu0 %321
    %vm323 = vcmp.eq.s32.totalorder %v270, %v322
    %vm324 = vcmp.eq.s32.totalorder %v271, %v322
    %vm325 = vmor %vm318, %vm323
    %vm326 = vmor %vm319, %vm324
    %v327 = vsel %vm325, 1, 0
    %v328 = vsel %vm326, 1, 0
    %v329 = vcvt.s32.f32 %v327
    %v330 = vcvt.s32.f32 %v328
    %v331 = vld [vmem:[#allocation8] sm:$0xff]
    %v332 = vld [vmem:[#allocation8 + $0x8] sm:$0xff]
    %v333 = vld [vmem:[#allocation8 + $0x10] sm:$0xff]
    %v334 = vld [vmem:[#allocation8 + $0x18] sm:$0xff]
    %v335 = vld [vmem:[#allocation8 + $0x20] sm:$0xff]
    %v336 = vld [vmem:[#allocation8 + $0x28] sm:$0xff]
    %v337 = vld [vmem:[#allocation8 + $0x30] sm:$0xff]
    %v338 = vld [vmem:[#allocation8 + $0x38] sm:$0xff]
    %v339 = vld [vmem:[#allocation8 + $0x40] sm:$0xff]
    %v340 = vld [vmem:[#allocation8 + $0x48] sm:$0xff]
    %v341 = vld [vmem:[#allocation8 + $0x50] sm:$0xff]
    %v342 = vld [vmem:[#allocation8 + $0x58] sm:$0xff]
    %v343 = vld [vmem:[#allocation8 + $0x60] sm:$0xff]
    %v344 = vld [vmem:[#allocation8 + $0x68] sm:$0xff]
    %v345 = vld [vmem:[#allocation8 + $0x70] sm:$0xff]
    %v346 = vld [vmem:[#allocation8 + $0x78] sm:$0xff]
    %v347 = vld [vmem:[#allocation8 + $0x80] sm:$0xff]
    %v348 = vld [vmem:[#allocation8 + $0x88] sm:$0xff]
    %v349 = vld [vmem:[#allocation8 + $0x90] sm:$0xff]
    %v350 = vld [vmem:[#allocation8 + $0x98] sm:$0xff]
    %v351 = vld [vmem:[#allocation8 + $0xa0] sm:$0xff]
    %v352 = vld [vmem:[#allocation8 + $0xa8] sm:$0xff]
    %v353 = vld [vmem:[#allocation8 + $0xb0] sm:$0xff]
    %v354 = vld [vmem:[#allocation8 + $0xb8] sm:$0xff]
    %v355 = vld [vmem:[#allocation8 + $0xc0] sm:$0xff]
    %v356 = vld [vmem:[#allocation8 + $0xc8] sm:$0xff]
    %v357 = vld [vmem:[#allocation8 + $0xd0] sm:$0xff]
    %v358 = vld [vmem:[#allocation8 + $0xd8] sm:$0xff]
    %v359 = vld [vmem:[#allocation8 + $0xe0] sm:$0xff]
    %v360 = vld [vmem:[#allocation8 + $0xe8] sm:$0xff]
    %v361 = vld [vmem:[#allocation8 + $0xf0] sm:$0xff]
    %v362 = vld [vmem:[#allocation8 + $0xf8] sm:$0xff]
    %363 = vmatprep.subr.mxu0 0.0
    %364 = vmatpush1.msra.mxu0 %v331
    %365 = vmatprep.subr.mxu0 0.0
    %366 = vmatpush1.msra.mxu0 %v332
    %367 = vmatprep.subr.mxu0 0.0
    %368 = vmatpush1.msra.mxu0 %v333
    %369 = vmatprep.subr.mxu0 0.0
    %370 = vmatpush1.msra.mxu0 %v334
    %371 = vmatprep.subr.mxu0 0.0
    %372 = vmatpush1.msra.mxu0 %v335
    %373 = vmatprep.subr.mxu0 0.0
    %374 = vmatpush1.msra.mxu0 %v336
    %375 = vmatprep.subr.mxu0 0.0
    %376 = vmatpush1.msra.mxu0 %v337
    %377 = vmatprep.subr.mxu0 0.0
    %378 = vmatpush1.msra.mxu0 %v338
    %379 = vmatprep.subr.mxu0 0.0
    %380 = vmatpush1.msra.mxu0 %v339
    %381 = vmatprep.subr.mxu0 0.0
    %382 = vmatpush1.msra.mxu0 %v340
    %383 = vmatprep.subr.mxu0 0.0
    %384 = vmatpush1.msra.mxu0 %v341
    %385 = vmatprep.subr.mxu0 0.0
    %386 = vmatpush1.msra.mxu0 %v342
    %387 = vmatprep.subr.mxu0 0.0
    %388 = vmatpush1.msra.mxu0 %v343
    %389 = vmatprep.subr.mxu0 0.0
    %390 = vmatpush1.msra.mxu0 %v344
    %391 = vmatprep.subr.mxu0 0.0
    %392 = vmatpush1.msra.mxu0 %v345
    %393 = vmatprep.subr.mxu0 0.0
    %394 = vmatpush1.msra.mxu0 %v346
    %395 = vmatprep.subr.mxu0 0.0
    %396 = vmatpush1.msra.mxu0 %v347
    %397 = vmatprep.subr.mxu0 0.0
    %398 = vmatpush1.msra.mxu0 %v348
    %399 = vmatprep.subr.mxu0 0.0
    %400 = vmatpush1.msra.mxu0 %v349
    %401 = vmatprep.subr.mxu0 0.0
    %402 = vmatpush1.msra.mxu0 %v350
    %403 = vmatprep.subr.mxu0 0.0
    %404 = vmatpush1.msra.mxu0 %v351
    %405 = vmatprep.subr.mxu0 0.0
    %406 = vmatpush1.msra.mxu0 %v352
    %407 = vmatprep.subr.mxu0 0.0
    %408 = vmatpush1.msra.mxu0 %v353
    %409 = vmatprep.subr.mxu0 0.0
    %410 = vmatpush1.msra.mxu0 %v354
    %411 = vmatprep.subr.mxu0 0.0
    %412 = vmatpush1.msra.mxu0 %v355
    %413 = vmatprep.subr.mxu0 0.0
    %414 = vmatpush1.msra.mxu0 %v356
    %415 = vmatprep.subr.mxu0 0.0
    %416 = vmatpush1.msra.mxu0 %v357
    %417 = vmatprep.subr.mxu0 0.0
    %418 = vmatpush1.msra.mxu0 %v358
    %419 = vmatprep.subr.mxu0 0.0
    %420 = vmatpush1.msra.mxu0 %v359
    %421 = vmatprep.subr.mxu0 0.0
    %422 = vmatpush1.msra.mxu0 %v360
    %423 = vmatprep.subr.mxu0 0.0
    %424 = vmatpush1.msra.mxu0 %v361
    %425 = vmatprep.subr.mxu0 0.0
    %426 = vmatpush1.msra.mxu0 %v362
    %427 = vmatprep.mubr.f32.mxu0 %v330
    %428 = vmatmul.mubr.f32.gmra.mrb[0].mxu0 %v329
    %v429 = vpop.f32.mrb[0].mxu0
    %v430 = vadd.f32 0.0, %v429
    %v431 = vpop.f32.mrb[0].mxu0
    %432 = vdwg.mxu0
    %v433 = vadd.f32 %v268, %v430
    %v434 = vadd.f32 %v433, %v80
    %435 = vst [vmem:[#allocation10] sm:$0x3] %v434
    // Predicated region
    $region46: #{tpu_custom_call.1} parent=1 // pred_check
      _
    $region47: #{tpu_custom_call.1} parent=1 // pred_check_branch
      %437 = sbr.rel (0) target = $region49
    $region48: #{tpu_custom_call.1} parent=1 // pred_region
      %s439 = ssub.s32 32, 32
      %440 = vsyncadd [#allocation4], %s439
      %s442 = sshll.u32 [#allocation10], 4
      %s443 = int_to_ptr.vmem [resolvable:$true] %s442
      %445 = dma.vmem_to_hbm [thread:$0]  %s443, 32, %s7, [#allocation4]
    $region49: #{tpu_custom_call.1} parent=1 // pred_fallthru
      _
    // Predicated region
    $region50: #{tpu_custom_call.1} parent=1 // pred_check
      _
    $region51: #{tpu_custom_call.1} parent=1 // pred_check_branch
      %447 = sbr.rel (0) target = $region53
    $region52: #{tpu_custom_call.1} parent=1 // pred_region
      %448 = dma.done [#allocation4], 32
    $region53: #{tpu_custom_call.1} parent=1 // pred_fallthru
      _
    %449 = vsyncpa [#allocation3], 1
    %450 = vsyncpa [#allocation6], 1
    %451 = vsyncpa [#allocation9], 1
    %452 = vsyncpa [#allocation4], 1

</llo_original>
